<compile_context>
chip_gen: v5e
topology: v5e:2x2
jax: 0.10.0
libtpu: 0.0.40
codegen_flags: <defaults>
</compile_context>

<pallas_src>
import functools

import jax
import jax.numpy as jnp
from jax.experimental import pallas as pl
from jax.experimental.pallas import tpu as pltpu

BN_EPS = 1e-5      # nn.BatchNorm1d default eps
FP = 128           # hidden feature widths (16/32/16) padded to one lane tile
FOUT_P = 8         # output features padded 2 -> 8 (narrow output slab)


def _mlp_kernel(x_ref,
                w1_ref, t1_ref,
                w2_ref, t2_ref,
                w3_ref, t3_ref,
                w4_ref, b4_ref,
                o_ref):
    # Block 1: fused (Linear + eval-BN) -> ReLU; Dropout is identity in eval.
    h = jnp.dot(x_ref[...], w1_ref[...], preferred_element_type=jnp.float32) + t1_ref[...]
    h = jnp.maximum(h, 0.0)

    # Block 2
    h = jnp.dot(h, w2_ref[...], preferred_element_type=jnp.float32) + t2_ref[...]
    h = jnp.maximum(h, 0.0)

    # Block 3
    h = jnp.dot(h, w3_ref[...], preferred_element_type=jnp.float32) + t3_ref[...]
    h = jnp.maximum(h, 0.0)

    # Output: Linear -> Sigmoid (exp + approx reciprocal both go to the EUP slot).
    z = jnp.dot(h, w4_ref[...], preferred_element_type=jnp.float32) + b4_ref[...]
    o_ref[...] = pl.reciprocal(1.0 + jnp.exp(-z), approx=True).astype(o_ref.dtype)


def _pad2d(a, rows, cols):
    out = jnp.zeros((rows, cols), jnp.float32)
    return out.at[: a.shape[0], : a.shape[1]].set(a.astype(jnp.float32))


def _pad_row(v, cols):
    out = jnp.zeros((1, cols), jnp.float32)
    return out.at[0, : v.shape[0]].set(v.astype(jnp.float32))


def prepare_params(params, input_dim=6):
    """One-time prep: fold bias + eval-mode BN into each Linear, pad features.

    Call once and reuse across forward calls; nothing here runs per call."""
    (w1, b1, g1, be1, m1, v1,
     w2, b2, g2, be2, m2, v2,
     w3, b3, g3, be3, m3, v3,
     w4, b4) = params

    def fold(w, b, g, be, m, v):
        # relu(((x @ w.T + b) - m) * g/sqrt(v+eps) + be)
        #   == relu(x @ (w.T * s) + ((b - m) * s + be)),  s = g/sqrt(v+eps)
        s = (g / jnp.sqrt(v + BN_EPS)).astype(jnp.float32)
        wf = w.T.astype(jnp.float32) * s[None, :]
        tf = (b.astype(jnp.float32) - m.astype(jnp.float32)) * s + be.astype(jnp.float32)
        return wf, tf

    w1f, t1f = fold(w1, b1, g1, be1, m1, v1)
    w2f, t2f = fold(w2, b2, g2, be2, m2, v2)
    w3f, t3f = fold(w3, b3, g3, be3, m3, v3)

    # Padded weight rows/cols and padded shifts are zero, so padded feature
    # lanes stay exactly zero through every ReLU block; padded output columns
    # are sliced off in the wrapper.
    return (
        _pad2d(w1f, input_dim, FP), _pad_row(t1f, FP),    # (6, 128), (1, 128)
        _pad2d(w2f, FP, FP),        _pad_row(t2f, FP),    # (128, 128), (1, 128)
        _pad2d(w3f, FP, FP),        _pad_row(t3f, FP),    # (128, 128), (1, 128)
        _pad2d(w4.T, FP, FOUT_P),   _pad_row(b4, FOUT_P), # (128, 8),  (1, 8)
    )


def _round_up(n, m):
    return ((n + m - 1) // m) * m


@functools.partial(jax.jit, static_argnames=("input_dim", "block_rows"))
def neural_network_forward(x, prepared, input_dim=6, block_rows=2048):
    """x: (B, input_dim) float32, prepared = prepare_params(...)  -> (B, 2) f32."""
    B = x.shape[0]
    assert x.shape[1] == input_dim

    # Batch tile: multiple of 8, capped at ~half the batch so the grid has at
    # least 2 blocks for mid-sized batches (both v7x TensorCores get work).
    bp8 = _round_up(max(B, 1), 8)
    half_cap = max(8, _round_up((bp8 + 1) // 2, 8))
    TB = max(8, (min(block_rows, half_cap) // 8) * 8)
    n_blocks = (B + TB - 1) // TB   # partial last block handled by Pallas OOB rules

    (w1, t1, w2, t2, w3, t3, w4, b4) = prepared

    # Constant index_map => fetched once, resident in VMEM for the whole grid.
    resident = lambda shape: pl.BlockSpec(shape, lambda i: (0, 0))

    out = pl.pallas_call(
        _mlp_kernel,
        out_shape=jax.ShapeDtypeStruct((B, FOUT_P), jnp.float32),
        grid=(n_blocks,),
        in_specs=[
            pl.BlockSpec((TB, input_dim), lambda i: (i, 0)),   # x tile, pipelined
            resident((input_dim, FP)), resident((1, FP)),      # layer 1
            resident((FP, FP)),        resident((1, FP)),      # layer 2
            resident((FP, FP)),        resident((1, FP)),      # layer 3
            resident((FP, FOUT_P)),    resident((1, FOUT_P)),  # output layer
        ],
        out_specs=pl.BlockSpec((TB, FOUT_P), lambda i: (i, 0)),
        compiler_params=pltpu.CompilerParams(
            dimension_semantics=("parallel",),
            # ~135 KiB resident f32 weights + double-buffered x/out tiles +
            # a few (TB,128) f32 intermediates: ~4 MiB at TB=2048, well inside
            # the scoped/physical VMEM budgets on v5e/v6e/v7x.
            vmem_limit_bytes=32 * 1024 * 1024,
        ),
    )(x.astype(jnp.float32), w1, t1, w2, t2, w3, t3, w4, b4)

    return out[:, :2]


def init_params(key, input_dim=6):
    """Deterministic synthetic parameters matching the PyTorch module's shapes."""
    dims = [(16, input_dim), (32, 16), (16, 32), (2, 16)]
    keys = jax.random.split(key, 20)
    ki = iter(range(20))

    def lin(out_f, in_f):
        w = jax.random.normal(keys[next(ki)], (out_f, in_f), jnp.float32) * 0.2
        b = jax.random.normal(keys[next(ki)], (out_f,), jnp.float32) * 0.1
        return w, b

    def bn(f):
        g = 1.0 + 0.1 * jax.random.normal(keys[next(ki)], (f,), jnp.float32)
        be = 0.1 * jax.random.normal(keys[next(ki)], (f,), jnp.float32)
        m = 0.05 * jax.random.normal(keys[next(ki)], (f,), jnp.float32)
        v = 1.0 + 0.1 * jax.random.uniform(keys[next(ki)], (f,), jnp.float32)
        return g, be, m, v

    w1, b1 = lin(*dims[0]); g1, be1, m1, v1 = bn(16)
    w2, b2 = lin(*dims[1]); g2, be2, m2, v2 = bn(32)
    w3, b3 = lin(*dims[2]); g3, be3, m3, v3 = bn(16)
    w4, b4 = lin(*dims[3])

    return (w1, b1, g1, be1, m1, v1,
            w2, b2, g2, be2, m2, v2,
            w3, b3, g3, be3, m3, v3,
            w4, b4)


def reference_forward(x, params):
    """Pure-JAX f32 reference with eval-mode PyTorch semantics."""
    (w1, b1, g1, be1, m1, v1,
     w2, b2, g2, be2, m2, v2,
     w3, b3, g3, be3, m3, v3,
     w4, b4) = params

    def blk(h, w, b, g, be, m, v):
        h = h @ w.T + b
        h = (h - m) / jnp.sqrt(v + BN_EPS) * g + be
        return jnp.maximum(h, 0.0)  # dropout is identity in eval

    h = blk(x, w1, b1, g1, be1, m1, v1)
    h = blk(h, w2, b2, g2, be2, m2, v2)
    h = blk(h, w3, b3, g3, be3, m3, v3)
    z = h @ w4.T + b4
    return jax.nn.sigmoid(z)


if __name__ == "__main__":
    key = jax.random.PRNGKey(0)
    kx, kp, kx2 = jax.random.split(key, 3)

    B, INPUT_DIM = 4, 6
    x = jax.random.normal(kx, (B, INPUT_DIM), jnp.float32)
    params = init_params(kp, input_dim=INPUT_DIM)
    prepared = prepare_params(params, input_dim=INPUT_DIM)   # one-time prep

    out = jax.block_until_ready(
        neural_network_forward(x, prepared, input_dim=INPUT_DIM))
    ref = reference_forward(x, params)
    assert out.shape == (B, 2), out.shape
    # f32 everywhere; only the approx reciprocal in the sigmoid deviates.
    assert jnp.max(jnp.abs(out - ref)) < 1e-2, (out, ref)

    # Second call: mid-sized batch -> TB is capped at ~B/2 so the grid has 2
    # blocks (both v7x TCs) and the last block is partial (OOB rows dropped).
    B2 = 300
    x2 = jax.random.normal(kx2, (B2, INPUT_DIM), jnp.float32)
    out2 = jax.block_until_ready(
        neural_network_forward(x2, prepared, input_dim=INPUT_DIM))
    ref2 = reference_forward(x2, params)
    assert out2.shape == (B2, 2), out2.shape
    assert jnp.max(jnp.abs(out2 - ref2)) < 1e-2

    print("KERNEL_OK")
</pallas_src>

<mosaic_0001>
module attributes {stable_mosaic.version = 11 : i64} {
  func.func @_mlp_kernel(%arg0: i32, %arg1: memref<8x6xf32, #tpu.memory_space<vmem>>, %arg2: memref<6x128xf32, #tpu.memory_space<vmem>>, %arg3: memref<1x128xf32, #tpu.memory_space<vmem>>, %arg4: memref<128x128xf32, #tpu.memory_space<vmem>>, %arg5: memref<1x128xf32, #tpu.memory_space<vmem>>, %arg6: memref<128x128xf32, #tpu.memory_space<vmem>>, %arg7: memref<1x128xf32, #tpu.memory_space<vmem>>, %arg8: memref<128x8xf32, #tpu.memory_space<vmem>>, %arg9: memref<1x8xf32, #tpu.memory_space<vmem>>, %arg10: memref<8x8xf32, #tpu.memory_space<vmem>>) attributes {dimension_semantics = [#tpu.dimension_semantics<parallel>], iteration_bounds = array<i64: 1>, scalar_prefetch = 0 : i64, scratch_operands = 0 : i64, tpu.core_type = #tpu.core_type<tc>, window_params = [{transform_indices = @transform_0, window_bounds = array<i64: 8, 6>}, {pipeline_mode = #tpu.pipeline_mode<synchronous>, transform_indices = @transform_1, window_bounds = array<i64: 6, 128>}, {pipeline_mode = #tpu.pipeline_mode<synchronous>, transform_indices = @transform_2, window_bounds = array<i64: 1, 128>}, {pipeline_mode = #tpu.pipeline_mode<synchronous>, transform_indices = @transform_3, window_bounds = array<i64: 128, 128>}, {pipeline_mode = #tpu.pipeline_mode<synchronous>, transform_indices = @transform_4, window_bounds = array<i64: 1, 128>}, {pipeline_mode = #tpu.pipeline_mode<synchronous>, transform_indices = @transform_5, window_bounds = array<i64: 128, 128>}, {pipeline_mode = #tpu.pipeline_mode<synchronous>, transform_indices = @transform_6, window_bounds = array<i64: 1, 128>}, {pipeline_mode = #tpu.pipeline_mode<synchronous>, transform_indices = @transform_7, window_bounds = array<i64: 128, 8>}, {pipeline_mode = #tpu.pipeline_mode<synchronous>, transform_indices = @transform_8, window_bounds = array<i64: 1, 8>}, {transform_indices = @transform_9, window_bounds = array<i64: 8, 8>}]} {
    %c0 = arith.constant 0 : index
    %c0_0 = arith.constant 0 : index
    %0 = vector.load %arg1[%c0, %c0_0] : memref<8x6xf32, #tpu.memory_space<vmem>>, vector<8x6xf32>
    %c0_1 = arith.constant 0 : index
    %c0_2 = arith.constant 0 : index
    %1 = vector.load %arg2[%c0_1, %c0_2] : memref<6x128xf32, #tpu.memory_space<vmem>>, vector<6x128xf32>
    %cst = arith.constant dense<0.000000e+00> : vector<8x128xf32>
    %2 = tpu.matmul %0, %1, %cst {dimension_numbers = #tpu.dot_dimension_numbers<[1], [0], [0], [1], [0, 0, 1, 1], [], []>} : vector<8x6xf32>, vector<6x128xf32>, vector<8x128xf32> -> vector<8x128xf32>
    %c0_3 = arith.constant 0 : index
    %c0_4 = arith.constant 0 : index
    %3 = vector.load %arg3[%c0_3, %c0_4] : memref<1x128xf32, #tpu.memory_space<vmem>>, vector<1x128xf32>
    %4 = vector.broadcast %3 : vector<1x128xf32> to vector<8x128xf32>
    %5 = arith.addf %2, %4 : vector<8x128xf32>
    %cst_5 = arith.constant 0.000000e+00 : f32
    %6 = vector.broadcast %cst_5 : f32 to vector<8x128xf32>
    %7 = arith.maximumf %5, %6 : vector<8x128xf32>
    %c0_6 = arith.constant 0 : index
    %c0_7 = arith.constant 0 : index
    %8 = vector.load %arg4[%c0_6, %c0_7] : memref<128x128xf32, #tpu.memory_space<vmem>>, vector<128x128xf32>
    %cst_8 = arith.constant dense<0.000000e+00> : vector<8x128xf32>
    %9 = tpu.matmul %7, %8, %cst_8 {dimension_numbers = #tpu.dot_dimension_numbers<[1], [0], [0], [1], [0, 0, 1, 1], [], []>} : vector<8x128xf32>, vector<128x128xf32>, vector<8x128xf32> -> vector<8x128xf32>
    %c0_9 = arith.constant 0 : index
    %c0_10 = arith.constant 0 : index
    %10 = vector.load %arg5[%c0_9, %c0_10] : memref<1x128xf32, #tpu.memory_space<vmem>>, vector<1x128xf32>
    %11 = vector.broadcast %10 : vector<1x128xf32> to vector<8x128xf32>
    %12 = arith.addf %9, %11 : vector<8x128xf32>
    %cst_11 = arith.constant 0.000000e+00 : f32
    %13 = vector.broadcast %cst_11 : f32 to vector<8x128xf32>
    %14 = arith.maximumf %12, %13 : vector<8x128xf32>
    %c0_12 = arith.constant 0 : index
    %c0_13 = arith.constant 0 : index
    %15 = vector.load %arg6[%c0_12, %c0_13] : memref<128x128xf32, #tpu.memory_space<vmem>>, vector<128x128xf32>
    %cst_14 = arith.constant dense<0.000000e+00> : vector<8x128xf32>
    %16 = tpu.matmul %14, %15, %cst_14 {dimension_numbers = #tpu.dot_dimension_numbers<[1], [0], [0], [1], [0, 0, 1, 1], [], []>} : vector<8x128xf32>, vector<128x128xf32>, vector<8x128xf32> -> vector<8x128xf32>
    %c0_15 = arith.constant 0 : index
    %c0_16 = arith.constant 0 : index
    %17 = vector.load %arg7[%c0_15, %c0_16] : memref<1x128xf32, #tpu.memory_space<vmem>>, vector<1x128xf32>
    %18 = vector.broadcast %17 : vector<1x128xf32> to vector<8x128xf32>
    %19 = arith.addf %16, %18 : vector<8x128xf32>
    %cst_17 = arith.constant 0.000000e+00 : f32
    %20 = vector.broadcast %cst_17 : f32 to vector<8x128xf32>
    %21 = arith.maximumf %19, %20 : vector<8x128xf32>
    %c0_18 = arith.constant 0 : index
    %c0_19 = arith.constant 0 : index
    %22 = vector.load %arg8[%c0_18, %c0_19] : memref<128x8xf32, #tpu.memory_space<vmem>>, vector<128x8xf32>
    %cst_20 = arith.constant dense<0.000000e+00> : vector<8x8xf32>
    %23 = tpu.matmul %21, %22, %cst_20 {dimension_numbers = #tpu.dot_dimension_numbers<[1], [0], [0], [1], [0, 0, 1, 1], [], []>} : vector<8x128xf32>, vector<128x8xf32>, vector<8x8xf32> -> vector<8x8xf32>
    %c0_21 = arith.constant 0 : index
    %c0_22 = arith.constant 0 : index
    %24 = vector.load %arg9[%c0_21, %c0_22] : memref<1x8xf32, #tpu.memory_space<vmem>>, vector<1x8xf32>
    %25 = vector.broadcast %24 : vector<1x8xf32> to vector<8x8xf32>
    %26 = arith.addf %23, %25 : vector<8x8xf32>
    %cst_23 = arith.constant 0.000000e+00 : f32
    %27 = vector.broadcast %cst_23 : f32 to vector<8x8xf32>
    %28 = arith.subf %27, %26 : vector<8x8xf32>
    %29 = math.exp %28 : vector<8x8xf32>
    %cst_24 = arith.constant 1.000000e+00 : f32
    %30 = vector.broadcast %cst_24 : f32 to vector<8x8xf32>
    %31 = arith.addf %30, %29 : vector<8x8xf32>
    %32 = tpu.reciprocal %31 {approx = true} : vector<8x8xf32> -> vector<8x8xf32>
    %c0_25 = arith.constant 0 : index
    %c0_26 = arith.constant 0 : index
    %33 = vector.load %arg10[%c0_25, %c0_26] : memref<8x8xf32, #tpu.memory_space<vmem>>, vector<8x8xf32>
    tpu.vector_store %arg10[%c0_25, %c0_26], %32 {strides = array<i32>} : memref<8x8xf32, #tpu.memory_space<vmem>>, vector<8x8xf32>,
    return
  }
  func.func @transform_0(%arg0: i32) -> (i32, i32) {
    %c0_i32 = arith.constant 0 : i32
    %c0_i32_0 = arith.constant 0 : i32
    return %arg0, %c0_i32 : i32, i32
  }
  func.func @transform_1(%arg0: i32) -> (i32, i32) {
    %c0_i32 = arith.constant 0 : i32
    %c0_i32_0 = arith.constant 0 : i32
    %c0_i32_1 = arith.constant 0 : i32
    return %c0_i32, %c0_i32_0 : i32, i32
  }
  func.func @transform_2(%arg0: i32) -> (i32, i32) {
    %c0_i32 = arith.constant 0 : i32
    %c0_i32_0 = arith.constant 0 : i32
    %c0_i32_1 = arith.constant 0 : i32
    return %c0_i32, %c0_i32_0 : i32, i32
  }
  func.func @transform_3(%arg0: i32) -> (i32, i32) {
    %c0_i32 = arith.constant 0 : i32
    %c0_i32_0 = arith.constant 0 : i32
    %c0_i32_1 = arith.constant 0 : i32
    return %c0_i32, %c0_i32_0 : i32, i32
  }
  func.func @transform_4(%arg0: i32) -> (i32, i32) {
    %c0_i32 = arith.constant 0 : i32
    %c0_i32_0 = arith.constant 0 : i32
    %c0_i32_1 = arith.constant 0 : i32
    return %c0_i32, %c0_i32_0 : i32, i32
  }
  func.func @transform_5(%arg0: i32) -> (i32, i32) {
    %c0_i32 = arith.constant 0 : i32
    %c0_i32_0 = arith.constant 0 : i32
    %c0_i32_1 = arith.constant 0 : i32
    return %c0_i32, %c0_i32_0 : i32, i32
  }
  func.func @transform_6(%arg0: i32) -> (i32, i32) {
    %c0_i32 = arith.constant 0 : i32
    %c0_i32_0 = arith.constant 0 : i32
    %c0_i32_1 = arith.constant 0 : i32
    return %c0_i32, %c0_i32_0 : i32, i32
  }
  func.func @transform_7(%arg0: i32) -> (i32, i32) {
    %c0_i32 = arith.constant 0 : i32
    %c0_i32_0 = arith.constant 0 : i32
    %c0_i32_1 = arith.constant 0 : i32
    return %c0_i32, %c0_i32_0 : i32, i32
  }
  func.func @transform_8(%arg0: i32) -> (i32, i32) {
    %c0_i32 = arith.constant 0 : i32
    %c0_i32_0 = arith.constant 0 : i32
    %c0_i32_1 = arith.constant 0 : i32
    return %c0_i32, %c0_i32_0 : i32, i32
  }
  func.func @transform_9(%arg0: i32) -> (i32, i32) {
    %c0_i32 = arith.constant 0 : i32
    %c0_i32_0 = arith.constant 0 : i32
    return %arg0, %c0_i32 : i32, i32
  }
}

</mosaic_0001>

<llo_original>
// kernel: neural_network_forward.1
$region0: #{neural_network_forward.1}
  #allocation0 [shape = 'u32[]', space=smem, size = 0x4, offset = 0x4, fixed_abs, tag = 'smem constant byte address 0x4 - core index']
  #allocation1 [shape = 'u32[72,128]{1,0:T(1,128)}', space=vmem, size = 0x9000, scoped, tag = 'internal scratch']
  %s0 = inlined_call_operand.hbm [shape: f32[4,6], index: 0, kind: input, shape index: {}]
  %s1 = inlined_call_operand.vmem [shape: f32[6,128], index: 1, kind: input, shape index: {}]
  %s2 = inlined_call_operand.vmem [shape: f32[1,128], index: 2, kind: input, shape index: {}]
  %s3 = inlined_call_operand.vmem [shape: f32[128,128], index: 3, kind: input, shape index: {}]
  %s4 = inlined_call_operand.vmem [shape: f32[1,128], index: 4, kind: input, shape index: {}]
  %s5 = inlined_call_operand.hbm [shape: f32[128,128], index: 5, kind: input, shape index: {}]
  %s6 = inlined_call_operand.vmem [shape: f32[1,128], index: 6, kind: input, shape index: {}]
  %s7 = inlined_call_operand.vmem [shape: f32[128,8], index: 7, kind: input, shape index: {}]
  %s8 = inlined_call_operand.vmem [shape: f32[1,8], index: 8, kind: input, shape index: {}]
  %s9 = inlined_call_operand.vmem [shape: f32[4,8], index: 9, kind: output, shape index: {}]
  %s10 = sld [smem:[#allocation0]]
  $region84: #{neural_network_forward.1} parent=0
    _
  %s12 = ssub.s32 1, %s10
  %s13 = scalar_select 0, %s12, %s10
  $region1: #{neural_network_forward.1} parent=0
    #allocation2 [shape = 'u8[4096]{0}', space=vmem, size = 0x1000, scoped, tag = 'input window, operand 0, single buffered']
    #allocation3 [shape = 's32[1]{0}', space=sflag, size = 0x4, scoped, tag = 'scoped memory for neural_network_forward.1']
    #allocation4 [shape = 'u8[65536]{0}', space=vmem, size = 0x10000, scoped, tag = 'input window, operand 5, single buffered']
    #allocation5 [shape = 's32[1]{0}', space=sflag, size = 0x4, scoped, tag = 'scoped memory for neural_network_forward.1']
    #allocation6 [shape = 'u8[4096]{0}', space=vmem, size = 0x1000, scoped, tag = 'output window, operand 0, single buffered']
    %14 = vsyncpa [#allocation3], 0
    %15 = vsyncpa [#allocation5], 0
    // Predicated region
    $region2: #{neural_network_forward.1} parent=1 // pred_check
      _
    $region3: #{neural_network_forward.1} parent=1 // pred_check_branch
      %17 = sbr.rel (0) target = $region5
    $region4: #{neural_network_forward.1} parent=1 // pred_region
      %19 = vsyncadd [#allocation3], 64
      %s20 = sshll.u32 %s0, 4
      %s21 = int_to_ptr.hbm [resolvable:$true] %s20
      %s22 = sshll.u32 [#allocation2], 4
      %s23 = int_to_ptr.vmem [resolvable:$true] %s22
      %28 = dma.hbm_to_vmem [thread:$0]  %s21, 64, %s23, [#allocation3], 64, 64, 4
    $region5: #{neural_network_forward.1} parent=1 // pred_fallthru
      _
    // Predicated region
    $region6: #{neural_network_forward.1} parent=1 // pred_check
      _
    $region7: #{neural_network_forward.1} parent=1 // pred_check_branch
      %30 = sbr.rel (0) target = $region9
    $region8: #{neural_network_forward.1} parent=1 // pred_region
      _
    $region9: #{neural_network_forward.1} parent=1 // pred_fallthru
      _
    // Predicated region
    $region10: #{neural_network_forward.1} parent=1 // pred_check
      _
    $region11: #{neural_network_forward.1} parent=1 // pred_check_branch
      %32 = sbr.rel (0) target = $region13
    $region12: #{neural_network_forward.1} parent=1 // pred_region
      _
    $region13: #{neural_network_forward.1} parent=1 // pred_fallthru
      _
    // Predicated region
    $region14: #{neural_network_forward.1} parent=1 // pred_check
      _
    $region15: #{neural_network_forward.1} parent=1 // pred_check_branch
      %34 = sbr.rel (0) target = $region17
    $region16: #{neural_network_forward.1} parent=1 // pred_region
      _
    $region17: #{neural_network_forward.1} parent=1 // pred_fallthru
      _
    // Predicated region
    $region18: #{neural_network_forward.1} parent=1 // pred_check
      _
    $region19: #{neural_network_forward.1} parent=1 // pred_check_branch
      %36 = sbr.rel (0) target = $region21
    $region20: #{neural_network_forward.1} parent=1 // pred_region
      _
    $region21: #{neural_network_forward.1} parent=1 // pred_fallthru
      _
    // Predicated region
    $region22: #{neural_network_forward.1} parent=1 // pred_check
      _
    $region23: #{neural_network_forward.1} parent=1 // pred_check_branch
      %38 = sbr.rel (0) target = $region25
    $region24: #{neural_network_forward.1} parent=1 // pred_region
      %40 = vsyncadd [#allocation5], 0
      %s41 = sshll.u32 %s5, 4
      %s42 = int_to_ptr.hbm [resolvable:$true] %s41
      %s43 = sshll.u32 [#allocation4], 4
      %s44 = int_to_ptr.vmem [resolvable:$true] %s43
      %49 = dma.hbm_to_vmem [thread:$0]  %s42, 2048, %s44, [#allocation5], 128, 128, 8
    $region25: #{neural_network_forward.1} parent=1 // pred_fallthru
      _
    // Predicated region
    $region26: #{neural_network_forward.1} parent=1 // pred_check
      _
    $region27: #{neural_network_forward.1} parent=1 // pred_check_branch
      %51 = sbr.rel (0) target = $region29
    $region28: #{neural_network_forward.1} parent=1 // pred_region
      _
    $region29: #{neural_network_forward.1} parent=1 // pred_fallthru
      _
    // Predicated region
    $region30: #{neural_network_forward.1} parent=1 // pred_check
      _
    $region31: #{neural_network_forward.1} parent=1 // pred_check_branch
      %53 = sbr.rel (0) target = $region33
    $region32: #{neural_network_forward.1} parent=1 // pred_region
      _
    $region33: #{neural_network_forward.1} parent=1 // pred_fallthru
      _
    // Predicated region
    $region34: #{neural_network_forward.1} parent=1 // pred_check
      _
    $region35: #{neural_network_forward.1} parent=1 // pred_check_branch
      %55 = sbr.rel (0) target = $region37
    $region36: #{neural_network_forward.1} parent=1 // pred_region
      _
    $region37: #{neural_network_forward.1} parent=1 // pred_fallthru
      _
    // Predicated region
    $region38: #{neural_network_forward.1} parent=1 // pred_check
      _
    $region39: #{neural_network_forward.1} parent=1 // pred_check_branch
      %57 = sbr.rel (0) target = $region41
    $region40: #{neural_network_forward.1} parent=1 // pred_region
      %59 = dma.done [#allocation3], 128
    $region41: #{neural_network_forward.1} parent=1 // pred_fallthru
      _
    // Predicated region
    $region42: #{neural_network_forward.1} parent=1 // pred_check
      _
    $region43: #{neural_network_forward.1} parent=1 // pred_check_branch
      %61 = sbr.rel (0) target = $region45
    $region44: #{neural_network_forward.1} parent=1 // pred_region
      %63 = dma.done [#allocation5], 2048
    $region45: #{neural_network_forward.1} parent=1 // pred_fallthru
      _
    %v64 = vld [vmem:[#allocation2] sm:$0xff]
    %v65 = vld [vmem:[%s1] sm:$0x3f]
    %v66 = vld [vmem:[%s2] sm:$0x1]
    %v68 = vperm.slane %v66, 0
    %vm70 = vcmask 48128
    %v72 = vsel %vm70, %v64, 0
    %vm74 = vcmask 1045504
    %v76 = vsel %vm74, %v65, 0
    %78 = vmatpush.msra.mxu0 0.0
    %79 = vmatpush.msra.mxu0 0.0
    %80 = vmatpush.msra.mxu0 0.0
    %81 = vmatpush.msra.mxu0 0.0
    %82 = vmatpush.msra.mxu0 0.0
    %83 = vmatpush.msra.mxu0 0.0
    %84 = vmatpush.msra.mxu0 0.0
    %85 = vmatpush.msra.mxu0 0.0
    %86 = vmatpush.msra.mxu0 0.0
    %87 = vmatpush.msra.mxu0 0.0
    %88 = vmatpush.msra.mxu0 0.0
    %89 = vmatpush.msra.mxu0 0.0
    %90 = vmatpush.msra.mxu0 0.0
    %91 = vmatpush.msra.mxu0 0.0
    %92 = vmatpush.msra.mxu0 0.0
    %93 = vmatpush.msra.mxu0 %v76
    %94 = vmatmul.f32.gmra.mxu0 %v72
    %v95 = vpop.f32.mrf.mxu0
    %v96 = vadd.f32 %v68, %v95
    %97 = vdwg.mxu0
    %v98 = vmax.f32 %v96, 0.0
    %v99 = vld [vmem:[%s3] sm:$0xff]
    %v100 = vld [vmem:[%s3 + $0x8] sm:$0xff]
    %v101 = vld [vmem:[%s3 + $0x10] sm:$0xff]
    %v102 = vld [vmem:[%s3 + $0x18] sm:$0xff]
    %v103 = vld [vmem:[%s3 + $0x20] sm:$0xff]
    %v104 = vld [vmem:[%s3 + $0x28] sm:$0xff]
    %v105 = vld [vmem:[%s3 + $0x30] sm:$0xff]
    %v106 = vld [vmem:[%s3 + $0x38] sm:$0xff]
    %v107 = vld [vmem:[%s3 + $0x40] sm:$0xff]
    %v108 = vld [vmem:[%s3 + $0x48] sm:$0xff]
    %v109 = vld [vmem:[%s3 + $0x50] sm:$0xff]
    %v110 = vld [vmem:[%s3 + $0x58] sm:$0xff]
    %v111 = vld [vmem:[%s3 + $0x60] sm:$0xff]
    %v112 = vld [vmem:[%s3 + $0x68] sm:$0xff]
    %v113 = vld [vmem:[%s3 + $0x70] sm:$0xff]
    %v114 = vld [vmem:[%s3 + $0x78] sm:$0xff]
    %v115 = vld [vmem:[%s4] sm:$0x1]
    %v117 = vperm.slane %v115, 0
    %119 = vmatpush.msra.mxu0 %v114
    %120 = vmatpush.msra.mxu0 %v113
    %121 = vmatpush.msra.mxu0 %v112
    %122 = vmatpush.msra.mxu0 %v111
    %123 = vmatpush.msra.mxu0 %v110
    %124 = vmatpush.msra.mxu0 %v109
    %125 = vmatpush.msra.mxu0 %v108
    %126 = vmatpush.msra.mxu0 %v107
    %127 = vmatpush.msra.mxu0 %v106
    %128 = vmatpush.msra.mxu0 %v105
    %129 = vmatpush.msra.mxu0 %v104
    %130 = vmatpush.msra.mxu0 %v103
    %131 = vmatpush.msra.mxu0 %v102
    %132 = vmatpush.msra.mxu0 %v101
    %133 = vmatpush.msra.mxu0 %v100
    %134 = vmatpush.msra.mxu0 %v99
    %135 = vmatmul.f32.gmra.mxu0 %v98
    %v136 = vpop.f32.mrf.mxu0
    %v137 = vadd.f32 %v117, %v136
    %138 = vdwg.mxu0
    %v139 = vmax.f32 %v137, 0.0
    %v140 = vld [vmem:[#allocation4] sm:$0xff]
    %v141 = vld [vmem:[#allocation4 + $0x8] sm:$0xff]
    %v142 = vld [vmem:[#allocation4 + $0x10] sm:$0xff]
    %v143 = vld [vmem:[#allocation4 + $0x18] sm:$0xff]
    %v144 = vld [vmem:[#allocation4 + $0x20] sm:$0xff]
    %v145 = vld [vmem:[#allocation4 + $0x28] sm:$0xff]
    %v146 = vld [vmem:[#allocation4 + $0x30] sm:$0xff]
    %v147 = vld [vmem:[#allocation4 + $0x38] sm:$0xff]
    %v148 = vld [vmem:[#allocation4 + $0x40] sm:$0xff]
    %v149 = vld [vmem:[#allocation4 + $0x48] sm:$0xff]
    %v150 = vld [vmem:[#allocation4 + $0x50] sm:$0xff]
    %v151 = vld [vmem:[#allocation4 + $0x58] sm:$0xff]
    %v152 = vld [vmem:[#allocation4 + $0x60] sm:$0xff]
    %v153 = vld [vmem:[#allocation4 + $0x68] sm:$0xff]
    %v154 = vld [vmem:[#allocation4 + $0x70] sm:$0xff]
    %v155 = vld [vmem:[#allocation4 + $0x78] sm:$0xff]
    %v156 = vld [vmem:[%s6] sm:$0x1]
    %v158 = vperm.slane %v156, 0
    %160 = vmatpush.msra.mxu0 %v155
    %161 = vmatpush.msra.mxu0 %v154
    %162 = vmatpush.msra.mxu0 %v153
    %163 = vmatpush.msra.mxu0 %v152
    %164 = vmatpush.msra.mxu0 %v151
    %165 = vmatpush.msra.mxu0 %v150
    %166 = vmatpush.msra.mxu0 %v149
    %167 = vmatpush.msra.mxu0 %v148
    %168 = vmatpush.msra.mxu0 %v147
    %169 = vmatpush.msra.mxu0 %v146
    %170 = vmatpush.msra.mxu0 %v145
    %171 = vmatpush.msra.mxu0 %v144
    %172 = vmatpush.msra.mxu0 %v143
    %173 = vmatpush.msra.mxu0 %v142
    %174 = vmatpush.msra.mxu0 %v141
    %175 = vmatpush.msra.mxu0 %v140
    %176 = vmatmul.f32.gmra.mxu0 %v139
    %v177 = vpop.f32.mrf.mxu0
    %v178 = vadd.f32 %v158, %v177
    %179 = vdwg.mxu0
    %v180 = vmax.f32 %v178, 0.0
    %v181 = vld [vmem:[%s7] sm:$0xff]
    %v182 = vld [vmem:[%s7 + $0x8] sm:$0xff]
    %v183 = vld [vmem:[%s7 + $0x10] sm:$0xff]
    %v184 = vld [vmem:[%s7 + $0x18] sm:$0xff]
    %v185 = vld [vmem:[%s7 + $0x20] sm:$0xff]
    %v186 = vld [vmem:[%s7 + $0x28] sm:$0xff]
    %v187 = vld [vmem:[%s7 + $0x30] sm:$0xff]
    %v188 = vld [vmem:[%s7 + $0x38] sm:$0xff]
    %v189 = vld [vmem:[%s7 + $0x40] sm:$0xff]
    %v190 = vld [vmem:[%s7 + $0x48] sm:$0xff]
    %v191 = vld [vmem:[%s7 + $0x50] sm:$0xff]
    %v192 = vld [vmem:[%s7 + $0x58] sm:$0xff]
    %v193 = vld [vmem:[%s7 + $0x60] sm:$0xff]
    %v194 = vld [vmem:[%s7 + $0x68] sm:$0xff]
    %v195 = vld [vmem:[%s7 + $0x70] sm:$0xff]
    %v196 = vld [vmem:[%s7 + $0x78] sm:$0xff]
    %v197 = vld [vmem:[%s8] sm:$0x1]
    %v199 = vperm.slane %v197, 0
    %201 = vmatpush.msra.mxu0 %v196
    %202 = vmatpush.msra.mxu0 %v195
    %203 = vmatpush.msra.mxu0 %v194
    %204 = vmatpush.msra.mxu0 %v193
    %205 = vmatpush.msra.mxu0 %v192
    %206 = vmatpush.msra.mxu0 %v191
    %207 = vmatpush.msra.mxu0 %v190
    %208 = vmatpush.msra.mxu0 %v189
    %209 = vmatpush.msra.mxu0 %v188
    %210 = vmatpush.msra.mxu0 %v187
    %211 = vmatpush.msra.mxu0 %v186
    %212 = vmatpush.msra.mxu0 %v185
    %213 = vmatpush.msra.mxu0 %v184
    %214 = vmatpush.msra.mxu0 %v183
    %215 = vmatpush.msra.mxu0 %v182
    %216 = vmatpush.msra.mxu0 %v181
    %217 = vmatmul.f32.gmra.mxu0 %v180
    %v218 = vpop.f32.mrf.mxu0
    %v219 = vadd.f32 %v199, %v218
    %220 = vdwg.mxu0
    %v221 = vsub.f32 0.0, %v219
    %v222 = vmul.f32 %v221, 1.442695
    %v223 = vpow.pop %v222
    %v224 = vadd.f32 %v223, 1.0
    %v225 = vrcp.pop %v224
    %vm226 = vcmask 64512
    %227 = vst.msk [vmem:[#allocation6] sm:$0xff] %vm226, %v225
    // Predicated region
    $region46: #{neural_network_forward.1} parent=1 // pred_check
      _
    $region47: #{neural_network_forward.1} parent=1 // pred_check_branch
      %229 = sbr.rel (0) target = $region49
    $region48: #{neural_network_forward.1} parent=1 // pred_region
      // Predicated region
      $region50: #{neural_network_forward.1} parent=48 // pred_check
        _
      $region51: #{neural_network_forward.1} parent=48 // pred_check_branch
        %231 = sbr.rel (0) target = $region53
      $region52: #{neural_network_forward.1} parent=48 // pred_region
        // Predicated region
        $region54: #{neural_network_forward.1} parent=52 // pred_check
          _
        $region55: #{neural_network_forward.1} parent=52 // pred_check_branch
          %233 = sbr.rel target = $region57
        $region56: #{neural_network_forward.1} parent=52 // pred_region
          // Predicated region
          $region69: #{neural_network_forward.1} parent=56 // pred_check
            _
          $region70: #{neural_network_forward.1} parent=56 // pred_check_branch
            %249 = sbr.rel (0) target = $region72
          $region71: #{neural_network_forward.1} parent=56 // pred_region
            %s251 = ssub.s32 16, 1
            loop: start=0, step=1, limit=1
            $region73: #{neural_network_forward.1} parent=71 // loop_pre_header
              _
            $region74: #{neural_network_forward.1} parent=71 // loop_header
              %s253 = sphi 0, %s257
              %p254 = scmp.ge.s32.totalorder %s253, 1
              %s258 = sphi [#allocation6], [#allocation6]
              %s259 = sphi %s9, %s9
            $region75: #{neural_network_forward.1} parent=71 // loop_header_branch
              %256 = sbr.rel (%p254) target = $region79
            $region76: #{neural_network_forward.1} parent=71 // loop_body
              %v260 = vld [vmem:[%s258] sm:%s251]
              %261 = vst [vmem:[%s259] sm:%s251] %v260
            $region77: #{neural_network_forward.1} parent=71 // loop_footer
              %s257 = sadd.s32 1, %s253
            $region78: #{neural_network_forward.1} parent=71 // loop_footer_branch
              %252 = sbr.rel target = $region74
            $region79: #{neural_network_forward.1} parent=71 // loop_exit
              _
          $region72: #{neural_network_forward.1} parent=56 // pred_fallthru
            _
        $region57: #{neural_network_forward.1} parent=52 // pred_fallthru
          _
        // Predicated region
        $region58: #{neural_network_forward.1} parent=52 // pred_check
          _
        $region59: #{neural_network_forward.1} parent=52 // pred_check_branch
          %235 = sbr.rel (0) target = $region61
        $region60: #{neural_network_forward.1} parent=52 // pred_region
          %s237 = ssub.s32 16, 1
          loop: start=0, step=1, limit=1
          $region62: #{neural_network_forward.1} parent=60 // loop_pre_header
            _
          $region63: #{neural_network_forward.1} parent=60 // loop_header
            %s239 = sphi 0, %s243
            %p240 = scmp.ge.s32.totalorder %s239, 1
            %s244 = sphi [#allocation6], [#allocation6]
            %s245 = sphi %s9, %s9
          $region64: #{neural_network_forward.1} parent=60 // loop_header_branch
            %242 = sbr.rel (%p240) target = $region68
          $region65: #{neural_network_forward.1} parent=60 // loop_body
            %v246 = vld [vmem:[%s244] sm:%s237]
            %247 = vst [vmem:[%s245] sm:%s237] %v246
          $region66: #{neural_network_forward.1} parent=60 // loop_footer
            %s243 = sadd.s32 1, %s239
          $region67: #{neural_network_forward.1} parent=60 // loop_footer_branch
            %238 = sbr.rel target = $region63
          $region68: #{neural_network_forward.1} parent=60 // loop_exit
            _
        $region61: #{neural_network_forward.1} parent=52 // pred_fallthru
          _
      $region53: #{neural_network_forward.1} parent=48 // pred_fallthru
        _
      %262 = vnop
    $region49: #{neural_network_forward.1} parent=1 // pred_fallthru
      _
    // Predicated region
    $region80: #{neural_network_forward.1} parent=1 // pred_check
      _
    $region81: #{neural_network_forward.1} parent=1 // pred_check_branch
      %264 = sbr.rel (0) target = $region83
    $region82: #{neural_network_forward.1} parent=1 // pred_region
      _
    $region83: #{neural_network_forward.1} parent=1 // pred_fallthru
      _
    %265 = vsyncpa [#allocation3], 1
    %266 = vsyncpa [#allocation5], 1

</llo_original>
